<compile_context>
chip_gen: v7x
topology: tpu7x:2x2x1
jax: 0.10.0
libtpu: 0.0.40
codegen_flags: <defaults>
</compile_context>

<pallas_src>
from functools import partial

import jax
import jax.numpy as jnp
from jax.experimental import pallas as pl
from jax.experimental.pallas import tpu as pltpu

LN_EPS = 1e-5  # nn.LayerNorm default


def _layernorm(x, gamma, beta):
    mu = jnp.mean(x, axis=-1, keepdims=True)
    var = jnp.mean((x - mu) ** 2, axis=-1, keepdims=True)
    return (x - mu) * jax.lax.rsqrt(var + LN_EPS) * gamma + beta


def _vmem_cap_bytes():
    try:
        return int(pltpu.get_tpu_info().vmem_capacity_bytes)
    except Exception:
        return 64 << 20  # conservative (v7x per-core VMEM)


def _clamp_vmem(requested):
    cap = _vmem_cap_bytes() - (4 << 20)   # leave headroom under physical
    return int(max(16 << 20, min(requested, cap)))


def _pick_batch_chunk(B, S_pad, E, hidden):
    # f32 bytes of per-batch-element activation + attention/MLP temporaries
    per_b = 4 * S_pad * (S_pad + hidden + 8 * E)
    budget = 12 << 20
    bc = max(1, min(B, budget // max(per_b, 1)))
    if B >= 2:
        # keep >=2 iterations on the parallel grid axis (v7x dual TensorCore)
        bc = min(bc, max(1, B // 2))
    while B % bc != 0:
        bc -= 1
    return bc


# ---------------------------------------------------------------------------
# Kernels
# ---------------------------------------------------------------------------
def patch_embed_kernel(x_ref, w_ref, b_ref, o_ref):
    # x: (tile, P) bf16  w: (P, E) bf16  b: (1, E) f32  -> o: (tile, E) f32
    o_ref[...] = jnp.dot(x_ref[...], w_ref[...],
                         preferred_element_type=jnp.float32) + b_ref[...]


def encoder_stack_kernel(
    x_ref, pos_ref, mask_ref,
    ln1g_ref, ln1b_ref,
    wq_ref, bq_ref, wk_ref, bk_ref, wv_ref, bv_ref, wo_ref, bo_ref,
    ln2g_ref, ln2b_ref, w1_ref, b1_ref, w2_ref, b2_ref,
    o_ref, ctx_ref,
    *, num_heads,
):
    """One grid step = (batch chunk b, transformer layer d).

    The activation for batch chunk b lives in o_ref (its output block index is
    constant across the depth axis, so it stays VMEM-resident for the whole
    depth sweep); per-layer bf16 weights are streamed via the depth grid axis
    (double-buffered by the Pallas pipeline).
    """
    layer = pl.program_id(1)

    @pl.when(layer == 0)
    def _():
        # Fold cls/pos sequence setup: x already holds [cls | patches] padded;
        # the positional embedding is added once, at layer 0.
        o_ref[...] = x_ref[...] + pos_ref[...]

    x = o_ref[...]                                   # (Bc, S, E) f32
    Bc, S, E = x.shape
    dh = E // num_heads
    scale = 1.0 / (dh ** 0.5)

    x2 = x.reshape(Bc * S, E)
    mask = mask_ref[...].reshape(1, 1, S)            # additive key-pad bias

    # --- multi-head self-attention (pre-norm) ------------------------------
    xn = _layernorm(x2, ln1g_ref[0], ln1b_ref[0])
    xn_b = xn.astype(jnp.bfloat16)                   # single cast, reused 3x

    # Full-width lane-dense projections (bf16 operands, f32 accumulation).
    q = jnp.dot(xn_b, wq_ref[0], preferred_element_type=jnp.float32) + bq_ref[0]
    k = jnp.dot(xn_b, wk_ref[0], preferred_element_type=jnp.float32) + bk_ref[0]
    v = jnp.dot(xn_b, wv_ref[0], preferred_element_type=jnp.float32) + bv_ref[0]

    qb = (q * scale).reshape(Bc, S, E).astype(jnp.bfloat16)   # fold 1/sqrt(dh)
    kb = k.reshape(Bc, S, E).astype(jnp.bfloat16)
    vb = v.reshape(Bc, S, E).astype(jnp.bfloat16)

    # Score/softmax/context per head; per-head contexts are written into a
    # lane-dense f32 scratch so the output projection is one full (E,E) matmul.
    # TODO(synk): for very long sequences (S >~ 2K) tile the query axis
    # (flash-style running max/sum) to bound the (S,S) temporaries on v7x.
    for h in range(num_heads):
        sl = slice(h * dh, (h + 1) * dh)
        s = jnp.einsum('bqd,bkd->bqk', qb[:, :, sl], kb[:, :, sl],
                       preferred_element_type=jnp.float32)    # (Bc, S, S)
        s = s + mask
        s = s - jnp.max(s, axis=-1, keepdims=True)
        p = jnp.exp(s)
        # reciprocal on the EUP slot instead of a VPU divide
        p = p * pl.reciprocal(jnp.sum(p, axis=-1, keepdims=True), approx=True)
        ctx = jnp.einsum('bqk,bkd->bqd', p.astype(jnp.bfloat16), vb[:, :, sl],
                         preferred_element_type=jnp.float32)  # (Bc, S, dh)
        ctx_ref[:, sl] = ctx.reshape(Bc * S, dh)

    attn = jnp.dot(ctx_ref[...].astype(jnp.bfloat16), wo_ref[0],
                   preferred_element_type=jnp.float32) + bo_ref[0]
    x2 = x2 + attn                                   # residual 1

    # --- MLP (pre-norm) -----------------------------------------------------
    xn2 = _layernorm(x2, ln2g_ref[0], ln2b_ref[0])
    h1 = jnp.dot(xn2.astype(jnp.bfloat16), w1_ref[0],
                 preferred_element_type=jnp.float32) + b1_ref[0]
    h1 = jax.nn.gelu(h1, approximate=False)          # exact GELU (PyTorch default)
    x2 = x2 + jnp.dot(h1.astype(jnp.bfloat16), w2_ref[0],
                      preferred_element_type=jnp.float32) + b2_ref[0]

    o_ref[...] = x2.reshape(Bc, S, E)


def head_kernel(x_ref, lng_ref, lnb_ref, wh_ref, bh_ref, o_ref):
    # x: (B, E) -> logits (B, num_classes); tiny, keep f32.
    xn = _layernorm(x_ref[...], lng_ref[...], lnb_ref[...])
    o_ref[...] = (
        jnp.dot(xn, wh_ref[...], preferred_element_type=jnp.float32)
        + bh_ref[...]
    )


# ---------------------------------------------------------------------------
# Wrappers
# ---------------------------------------------------------------------------
def patch_embed(x, conv_w, conv_b, patch_size):
    """Conv3d(kernel=stride=patch) == patchify + linear projection."""
    B, C, D, H, W = x.shape
    pd, ph, pw = patch_size
    E = conv_w.shape[0]
    P = C * pd * ph * pw
    # (B, C, D, H, W) -> (rows, C*pd*ph*pw)
    xp = x.reshape(B, C, D // pd, pd, H // ph, ph, W // pw, pw)
    xp = xp.transpose(0, 2, 4, 6, 1, 3, 5, 7)
    rows = B * (D // pd) * (H // ph) * (W // pw)
    xp = xp.reshape(rows, P).astype(jnp.bfloat16)        # halve the largest DMA
    w2 = conv_w.reshape(E, P).T.astype(jnp.bfloat16)     # (P, E) bf16

    # Tile token rows so real 3D volumes stream through VMEM with pipelining.
    tile = 256 if rows >= 256 else ((rows + 7) // 8) * 8
    rows_pad = pl.cdiv(rows, tile) * tile
    if rows_pad != rows:
        xp = jnp.pad(xp, ((0, rows_pad - rows), (0, 0)))

    vmem = _clamp_vmem(2 * (tile * P * 2 + P * E * 2 + tile * E * 4) + (8 << 20))

    out = pl.pallas_call(
        patch_embed_kernel,
        out_shape=jax.ShapeDtypeStruct((rows_pad, E), jnp.float32),
        grid=(rows_pad // tile,),
        in_specs=[
            pl.BlockSpec((tile, P), lambda i: (i, 0)),
            pl.BlockSpec((P, E), lambda i: (0, 0)),
            pl.BlockSpec((1, E), lambda i: (0, 0)),
        ],
        out_specs=pl.BlockSpec((tile, E), lambda i: (i, 0)),
        compiler_params=pltpu.CompilerParams(
            dimension_semantics=("parallel",),
            vmem_limit_bytes=vmem),
    )(xp, w2, conv_b.reshape(1, E).astype(jnp.float32))
    return out[:rows].reshape(B, -1, E)


def encoder_stack(seq, pos, mask_bias, blocks, *, num_heads):
    """All transformer layers fused in one pallas_call, grid = (B//Bc, depth)."""
    B, S_pad, E = seq.shape
    depth = len(blocks)
    hidden = blocks[0]["w1"].shape[1]

    Bc = _pick_batch_chunk(B, S_pad, E, hidden)
    num_chunks = B // Bc

    bf = jnp.bfloat16

    def stack(name, dtype=jnp.float32):
        return jnp.stack([p[name].astype(dtype) for p in blocks], axis=0)

    # Weights are stored bf16 (streamed every layer); LN params / biases stay f32.
    ops = [
        stack("ln1_g"), stack("ln1_b"),
        stack("wq", bf), stack("bq"),
        stack("wk", bf), stack("bk"),
        stack("wv", bf), stack("bv"),
        stack("wo", bf), stack("bo"),
        stack("ln2_g"), stack("ln2_b"),
        stack("w1", bf), stack("b1"),
        stack("w2", bf), stack("b2"),
    ]

    def wspec(arr):
        nz = arr.ndim - 1
        return pl.BlockSpec((1,) + arr.shape[1:],
                            lambda b, d, _nz=nz: (d,) + (0,) * _nz)

    in_specs = [
        pl.BlockSpec((Bc, S_pad, E), lambda b, d: (b, 0, 0)),   # padded input seq
        pl.BlockSpec((1, S_pad, E), lambda b, d: (0, 0, 0)),    # pos embed
        pl.BlockSpec((1, S_pad), lambda b, d: (0, 0)),          # key-pad bias
    ] + [wspec(a) for a in ops]

    # Explicit VMEM budget: double-buffered bf16 layer weights + resident
    # activation + attention/MLP temporaries + margin, clamped to physical.
    layer_w_bytes = 2 * (4 * E * E + 2 * E * hidden)       # bf16 weights / layer
    layer_misc = 4 * (8 * E + hidden)                      # f32 LN params + biases
    act_bytes = 4 * Bc * S_pad * E
    tmp_bytes = (4 * Bc * S_pad * S_pad                    # (S,S) f32 score/prob
                 + 4 * Bc * S_pad * hidden                 # MLP hidden
                 + 6 * 4 * Bc * S_pad * E)                 # q/k/v/ctx & friends
    vmem = _clamp_vmem(2 * (layer_w_bytes + layer_misc) + 3 * act_bytes
                       + tmp_bytes + (8 << 20))

    return pl.pallas_call(
        partial(encoder_stack_kernel, num_heads=num_heads),
        out_shape=jax.ShapeDtypeStruct((B, S_pad, E), jnp.float32),
        grid=(num_chunks, depth),
        in_specs=in_specs,
        out_specs=pl.BlockSpec((Bc, S_pad, E), lambda b, d: (b, 0, 0)),
        scratch_shapes=[pltpu.VMEM((Bc * S_pad, E), jnp.float32)],  # ctx buffer
        compiler_params=pltpu.CompilerParams(
            dimension_semantics=("parallel", "arbitrary"),
            vmem_limit_bytes=vmem),
    )(seq, pos, mask_bias, *ops)


def vit3d_forward(x, params, *, patch_size, num_heads):
    # 1. patch embedding (Conv3d-as-matmul, tiled over token rows)
    tokens = patch_embed(x, params["conv_w"], params["conv_b"], patch_size)
    B, N, E = tokens.shape
    S = N + 1
    S_pad = ((S + 127) // 128) * 128      # lane-dense sequence padding

    # 2. cls token concat + padding (tiny glue); pos-embed add happens inside
    #    the fused encoder kernel at layer 0.
    cls = jnp.broadcast_to(params["cls_token"], (B, 1, E))
    seq = jnp.concatenate([cls, tokens], axis=1)                 # (B, S, E)
    seq = jnp.pad(seq, ((0, 0), (0, S_pad - S), (0, 0)))
    pos = jnp.pad(params["pos_embed"][:, :S],
                  ((0, 0), (0, S_pad - S), (0, 0)))
    # additive key-padding bias: 0 for real keys, -1e30 for the padded tail
    mask_bias = jnp.where(jnp.arange(S_pad) < S, 0.0, -1e30
                          ).astype(jnp.float32).reshape(1, S_pad)

    # 3. all transformer blocks in one pallas_call (activation VMEM-resident
    #    across depth, per-layer bf16 weights streamed via the depth grid axis).
    seq = encoder_stack(seq, pos, mask_bias, params["blocks"],
                        num_heads=num_heads)

    # 4. final norm + classification head on the cls token
    cls_tok = seq[:, 0]
    num_classes = params["head_w"].shape[1]
    return pl.pallas_call(
        head_kernel,
        out_shape=jax.ShapeDtypeStruct((B, num_classes), jnp.float32),
    )(cls_tok, params["norm_g"], params["norm_b"],
      params["head_w"], params["head_b"])


# ---------------------------------------------------------------------------
# Pure-JAX reference (same math, f32 everywhere) for a correctness check
# ---------------------------------------------------------------------------
def vit3d_reference(x, params, *, patch_size, num_heads):
    B, C, D, H, W = x.shape
    pd, ph, pw = patch_size
    E = params["conv_w"].shape[0]
    xp = x.reshape(B, C, D // pd, pd, H // ph, ph, W // pw, pw)
    xp = xp.transpose(0, 2, 4, 6, 1, 3, 5, 7).reshape(B, -1, C * pd * ph * pw)
    tokens = xp @ params["conv_w"].reshape(E, -1).T + params["conv_b"]
    cls = jnp.broadcast_to(params["cls_token"], (B, 1, E))
    seq = jnp.concatenate([cls, tokens], axis=1)
    seq = seq + params["pos_embed"][:, : seq.shape[1]]
    S = seq.shape[1]
    dh = E // num_heads
    for p in params["blocks"]:
        xn = _layernorm(seq, p["ln1_g"], p["ln1_b"])
        q = (xn @ p["wq"] + p["bq"]).reshape(B, S, num_heads, dh).transpose(0, 2, 1, 3)
        k = (xn @ p["wk"] + p["bk"]).reshape(B, S, num_heads, dh).transpose(0, 2, 1, 3)
        v = (xn @ p["wv"] + p["bv"]).reshape(B, S, num_heads, dh).transpose(0, 2, 1, 3)
        s = jnp.einsum("bhqd,bhkd->bhqk", q, k) / (dh ** 0.5)
        a = jax.nn.softmax(s, axis=-1)
        o = jnp.einsum("bhqk,bhkd->bhqd", a, v)
        o = o.transpose(0, 2, 1, 3).reshape(B, S, E)
        seq = seq + (o @ p["wo"] + p["bo"])
        xn2 = _layernorm(seq, p["ln2_g"], p["ln2_b"])
        h1 = jax.nn.gelu(xn2 @ p["w1"] + p["b1"], approximate=False)
        seq = seq + (h1 @ p["w2"] + p["b2"])
    cls_tok = _layernorm(seq[:, 0], params["norm_g"], params["norm_b"])
    return cls_tok @ params["head_w"] + params["head_b"]


# ---------------------------------------------------------------------------
# Deterministic parameter construction
# ---------------------------------------------------------------------------
def make_params(key, *, in_channels, patch_size, embed_dim, depth,
                num_heads, mlp_ratio, num_classes, num_patches):
    pd, ph, pw = patch_size
    hidden = int(embed_dim * mlp_ratio)
    ks = iter(jax.random.split(key, 8 + depth * 16))

    def nrm(shape, scale=0.02):
        return (scale * jax.random.normal(next(ks), shape)).astype(jnp.float32)

    params = {
        "conv_w": nrm((embed_dim, in_channels, pd, ph, pw)),
        "conv_b": nrm((embed_dim,)),
        "cls_token": nrm((1, 1, embed_dim)),
        "pos_embed": nrm((1, num_patches + 1, embed_dim)),
        "norm_g": 1.0 + nrm((1, embed_dim)),
        "norm_b": nrm((1, embed_dim)),
        "head_w": nrm((embed_dim, num_classes)),
        "head_b": nrm((1, num_classes)),
        "blocks": [],
    }
    for _ in range(depth):
        params["blocks"].append({
            "ln1_g": 1.0 + nrm((1, embed_dim)),
            "ln1_b": nrm((1, embed_dim)),
            "wq": nrm((embed_dim, embed_dim)),
            "bq": nrm((1, embed_dim)),
            "wk": nrm((embed_dim, embed_dim)),
            "bk": nrm((1, embed_dim)),
            "wv": nrm((embed_dim, embed_dim)),
            "bv": nrm((1, embed_dim)),
            "wo": nrm((embed_dim, embed_dim)),
            "bo": nrm((1, embed_dim)),
            "ln2_g": 1.0 + nrm((1, embed_dim)),
            "ln2_b": nrm((1, embed_dim)),
            "w1": nrm((embed_dim, hidden)),
            "b1": nrm((1, hidden)),
            "w2": nrm((hidden, embed_dim)),
            "b2": nrm((1, embed_dim)),
        })
    return params


# ---------------------------------------------------------------------------
if __name__ == "__main__":
    # Small, forward-consistent configuration.
    B, C = 2, 1
    input_shape = (8, 16, 16)           # (D, H, W)
    patch_size = (4, 4, 4)
    embed_dim = 32
    depth = 2
    num_heads = 4
    mlp_ratio = 4.0
    num_classes = 2
    num_patches = ((input_shape[0] // 4) * (input_shape[1] // 4)
                   * (input_shape[2] // 4))

    key = jax.random.PRNGKey(0)
    k_x, k_p = jax.random.split(key)
    x = jax.random.normal(k_x, (B, C, *input_shape), dtype=jnp.float32)
    params = make_params(
        k_p, in_channels=C, patch_size=patch_size, embed_dim=embed_dim,
        depth=depth, num_heads=num_heads, mlp_ratio=mlp_ratio,
        num_classes=num_classes, num_patches=num_patches,
    )

    out = vit3d_forward(x, params, patch_size=patch_size, num_heads=num_heads)
    out = jax.block_until_ready(out)

    ref = vit3d_reference(x, params, patch_size=patch_size, num_heads=num_heads)
    assert out.shape == (B, num_classes)
    # bf16 MXU operands (f32 accumulation) + approx softmax reciprocal
    # -> relaxed tolerance vs the pure-f32 reference.
    assert jnp.allclose(out, ref, atol=1e-2, rtol=1e-2), (out, ref)

    print("KERNEL_OK")
</pallas_src>

<mosaic_0001>
module attributes {stable_mosaic.version = 11 : i64} {
  func.func @patch_embed_kernel(%arg0: i32, %arg1: memref<64x64xbf16, #tpu.memory_space<vmem>>, %arg2: memref<64x32xbf16, #tpu.memory_space<vmem>>, %arg3: memref<1x32xf32, #tpu.memory_space<vmem>>, %arg4: memref<64x32xf32, #tpu.memory_space<vmem>>) attributes {dimension_semantics = [#tpu.dimension_semantics<parallel>], iteration_bounds = array<i64: 1>, scalar_prefetch = 0 : i64, scratch_operands = 0 : i64, tpu.core_type = #tpu.core_type<tc>, window_params = [{transform_indices = @transform_0, window_bounds = array<i64: 64, 64>}, {pipeline_mode = #tpu.pipeline_mode<synchronous>, transform_indices = @transform_1, window_bounds = array<i64: 64, 32>}, {pipeline_mode = #tpu.pipeline_mode<synchronous>, transform_indices = @transform_2, window_bounds = array<i64: 1, 32>}, {transform_indices = @transform_3, window_bounds = array<i64: 64, 32>}]} {
    %c0 = arith.constant 0 : index
    %c0_0 = arith.constant 0 : index
    %0 = vector.load %arg1[%c0, %c0_0] : memref<64x64xbf16, #tpu.memory_space<vmem>>, vector<64x64xbf16>
    %c0_1 = arith.constant 0 : index
    %c0_2 = arith.constant 0 : index
    %1 = vector.load %arg2[%c0_1, %c0_2] : memref<64x32xbf16, #tpu.memory_space<vmem>>, vector<64x32xbf16>
    %cst = arith.constant dense<0.000000e+00> : vector<64x32xf32>
    %2 = tpu.matmul %0, %1, %cst {dimension_numbers = #tpu.dot_dimension_numbers<[1], [0], [0], [1], [0, 0, 1, 1], [], []>} : vector<64x64xbf16>, vector<64x32xbf16>, vector<64x32xf32> -> vector<64x32xf32>
    %c0_3 = arith.constant 0 : index
    %c0_4 = arith.constant 0 : index
    %3 = vector.load %arg3[%c0_3, %c0_4] : memref<1x32xf32, #tpu.memory_space<vmem>>, vector<1x32xf32>
    %4 = vector.broadcast %3 : vector<1x32xf32> to vector<64x32xf32>
    %5 = arith.addf %2, %4 : vector<64x32xf32>
    %c0_5 = arith.constant 0 : index
    %c0_6 = arith.constant 0 : index
    %6 = vector.load %arg4[%c0_5, %c0_6] : memref<64x32xf32, #tpu.memory_space<vmem>>, vector<64x32xf32>
    tpu.vector_store %arg4[%c0_5, %c0_6], %5 {strides = array<i32>} : memref<64x32xf32, #tpu.memory_space<vmem>>, vector<64x32xf32>,
    return
  }
  func.func @transform_0(%arg0: i32) -> (i32, i32) {
    %c0_i32 = arith.constant 0 : i32
    %c0_i32_0 = arith.constant 0 : i32
    return %arg0, %c0_i32 : i32, i32
  }
  func.func @transform_1(%arg0: i32) -> (i32, i32) {
    %c0_i32 = arith.constant 0 : i32
    %c0_i32_0 = arith.constant 0 : i32
    %c0_i32_1 = arith.constant 0 : i32
    return %c0_i32, %c0_i32_0 : i32, i32
  }
  func.func @transform_2(%arg0: i32) -> (i32, i32) {
    %c0_i32 = arith.constant 0 : i32
    %c0_i32_0 = arith.constant 0 : i32
    %c0_i32_1 = arith.constant 0 : i32
    return %c0_i32, %c0_i32_0 : i32, i32
  }
  func.func @transform_3(%arg0: i32) -> (i32, i32) {
    %c0_i32 = arith.constant 0 : i32
    %c0_i32_0 = arith.constant 0 : i32
    return %arg0, %c0_i32 : i32, i32
  }
}

</mosaic_0001>

<llo_original>
// kernel: tpu_custom_call.1
$region0: #{tpu_custom_call.1}
  #allocation0 [shape = 'u32[]', space=smem, size = 0x4, offset = 0x4, fixed_abs, tag = 'smem constant byte address 0x4 - core index']
  #allocation1 [shape = 'u32[144,128]{1,0:T(1,128)}', space=vmem, size = 0x12000, scoped, tag = 'internal scratch']
  %s0 = inlined_call_operand.vmem [shape: bf16[64,64], index: 0, kind: input, shape index: {}]
  %s1 = inlined_call_operand.vmem [shape: bf16[64,32], index: 1, kind: input, shape index: {}]
  %s2 = inlined_call_operand.vmem [shape: f32[1,32], index: 2, kind: input, shape index: {}]
  %s3 = inlined_call_operand.vmem [shape: f32[64,32], index: 3, kind: output, shape index: {}]
  %s4 = sld [smem:[#allocation0]]
  $region22: #{tpu_custom_call.1} parent=0
    _
  %s6 = ssub.s32 1, %s4
  %s7 = scalar_select 0, %s6, %s4
  // Predicated region
  $region2: #{tpu_custom_call.1} parent=0 // pred_check
    _
  $region3: #{tpu_custom_call.1} parent=0 // pred_check_branch
    %9 = sbr.rel (0) target = $region5
  $region4: #{tpu_custom_call.1} parent=0 // pred_region
    _
  $region5: #{tpu_custom_call.1} parent=0 // pred_fallthru
    _
  // Predicated region
  $region6: #{tpu_custom_call.1} parent=0 // pred_check
    _
  $region7: #{tpu_custom_call.1} parent=0 // pred_check_branch
    %11 = sbr.rel (0) target = $region9
  $region8: #{tpu_custom_call.1} parent=0 // pred_region
    _
  $region9: #{tpu_custom_call.1} parent=0 // pred_fallthru
    _
  // Predicated region
  $region10: #{tpu_custom_call.1} parent=0 // pred_check
    _
  $region11: #{tpu_custom_call.1} parent=0 // pred_check_branch
    %13 = sbr.rel (0) target = $region13
  $region12: #{tpu_custom_call.1} parent=0 // pred_region
    _
  $region13: #{tpu_custom_call.1} parent=0 // pred_fallthru
    _
  %v15 = vld [vmem:[%s0] sm:$0xf]
  %v16 = vld [vmem:[%s0 + $0x4] sm:$0xf]
  %v17 = vld [vmem:[%s0 + $0x8] sm:$0xf]
  %v18 = vld [vmem:[%s0 + $0xc] sm:$0xf]
  %v19 = vld [vmem:[%s0 + $0x10] sm:$0xf]
  %v20 = vld [vmem:[%s0 + $0x14] sm:$0xf]
  %v21 = vld [vmem:[%s0 + $0x18] sm:$0xf]
  %v22 = vld [vmem:[%s0 + $0x1c] sm:$0xf]
  %v23 = vld [vmem:[%s1] sm:$0xf]
  %v24 = vld [vmem:[%s1 + $0x4] sm:$0xf]
  %v25 = vld [vmem:[%s1 + $0x8] sm:$0xf]
  %v26 = vld [vmem:[%s1 + $0xc] sm:$0xf]
  %v27 = vld [vmem:[%s1 + $0x10] sm:$0xf]
  %v28 = vld [vmem:[%s1 + $0x14] sm:$0xf]
  %v29 = vld [vmem:[%s1 + $0x18] sm:$0xf]
  %v30 = vld [vmem:[%s1 + $0x1c] sm:$0xf]
  %v31 = vld [vmem:[%s2] sm:$0x1]
  %v33 = vlaneseq
  %v34 = vshrl.u32 %v33, 7
  %v35 = vsub.s32 0, %v34
  %v36 = vrot.slane %v31, %v35
  %v46 = vunpack.c.l.b16 %v15
  %v47 = vunpack.c.l.b16 %v16
  %v48 = vunpack.c.l.b16 %v17
  %v49 = vunpack.c.l.b16 %v18
  %v50 = vunpack.c.l.b16 %v19
  %v51 = vunpack.c.l.b16 %v20
  %v52 = vunpack.c.l.b16 %v21
  %v53 = vunpack.c.l.b16 %v22
  %v54 = vpack.c.b16 %v47, %v46
  %v55 = vpack.c.b16 %v49, %v48
  %v56 = vpack.c.b16 %v51, %v50
  %v57 = vpack.c.b16 %v53, %v52
  %v66 = vunpack.c.l.b16 %v23
  %v67 = vunpack.c.l.b16 %v24
  %v68 = vunpack.c.l.b16 %v25
  %v69 = vunpack.c.l.b16 %v26
  %v70 = vunpack.c.l.b16 %v27
  %v71 = vunpack.c.l.b16 %v28
  %v72 = vunpack.c.l.b16 %v29
  %v73 = vunpack.c.l.b16 %v30
  %v74 = vpack.c.b16 %v67, %v66
  %v75 = vpack.c.b16 %v69, %v68
  %v76 = vpack.c.b16 %v71, %v70
  %v77 = vpack.c.b16 %v73, %v72
  %vm82 = vcmask 523264
  %v84 = vsel %vm82, %v54, 0
  %v87 = vsel %vm82, %v55, 0
  %v90 = vsel %vm82, %v56, 0
  %v93 = vsel %vm82, %v57, 0
  %95 = vmatprep.subr.bf16.mxu0 0
  %96 = vmatpush1.bf16.msra.mxu0 %v74
  %97 = vmatprep.subr.bf16.mxu0 0
  %98 = vmatpush1.bf16.msra.mxu0 %v75
  %99 = vmatprep.subr.bf16.mxu0 0
  %100 = vmatpush1.bf16.msra.mxu0 %v76
  %101 = vmatprep.subr.bf16.mxu0 0
  %102 = vmatpush1.bf16.msra.mxu0 %v77
  %103 = vmatprep.subr.bf16.mxu0 0
  %104 = vmatpush1.bf16.msra.mxu0 0
  %105 = vmatprep.subr.bf16.mxu0 0
  %106 = vmatpush1.bf16.msra.mxu0 0
  %107 = vmatprep.subr.bf16.mxu0 0
  %108 = vmatpush1.bf16.msra.mxu0 0
  %109 = vmatprep.subr.bf16.mxu0 0
  %110 = vmatpush1.bf16.msra.mxu0 0
  %111 = vmatprep.subr.bf16.mxu0 0
  %112 = vmatpush1.bf16.msra.mxu0 0
  %113 = vmatprep.subr.bf16.mxu0 0
  %114 = vmatpush1.bf16.msra.mxu0 0
  %115 = vmatprep.subr.bf16.mxu0 0
  %116 = vmatpush1.bf16.msra.mxu0 0
  %117 = vmatprep.subr.bf16.mxu0 0
  %118 = vmatpush1.bf16.msra.mxu0 0
  %119 = vmatprep.subr.bf16.mxu0 0
  %120 = vmatpush1.bf16.msra.mxu0 0
  %121 = vmatprep.subr.bf16.mxu0 0
  %122 = vmatpush1.bf16.msra.mxu0 0
  %123 = vmatprep.subr.bf16.mxu0 0
  %124 = vmatpush1.bf16.msra.mxu0 0
  %125 = vmatprep.subr.bf16.mxu0 0
  %126 = vmatpush1.bf16.msra.mxu0 0
  %127 = vmatprep.mubr.bf16.mxu0 0
  %128 = vmatmul.mubr.bf16.gmra.mrb[0].mxu0 %v84
  %v129 = vpop.f32.mrb[0].mxu0
  %v130 = vadd.f32 %v36, %v129
  %v131 = vpop.f32.mrb[0].mxu0
  %v132 = vpop.f32.mrb[0].mxu0
  %v133 = vadd.f32 %v36, %v132
  %v134 = vpop.f32.mrb[0].mxu0
  %135 = vmatprep.mubr.bf16.mxu0 0
  %136 = vmatmul.mubr.bf16.gmra.mrb[0].mxu0 %v87
  %v137 = vpop.f32.mrb[0].mxu0
  %v138 = vadd.f32 %v36, %v137
  %v139 = vpop.f32.mrb[0].mxu0
  %v140 = vpop.f32.mrb[0].mxu0
  %v141 = vadd.f32 %v36, %v140
  %v142 = vpop.f32.mrb[0].mxu0
  %143 = vmatprep.mubr.bf16.mxu0 0
  %144 = vmatmul.mubr.bf16.gmra.mrb[0].mxu0 %v90
  %v145 = vpop.f32.mrb[0].mxu0
  %v146 = vadd.f32 %v36, %v145
  %v147 = vpop.f32.mrb[0].mxu0
  %v148 = vpop.f32.mrb[0].mxu0
  %v149 = vadd.f32 %v36, %v148
  %v150 = vpop.f32.mrb[0].mxu0
  %151 = vmatprep.mubr.bf16.mxu0 0
  %152 = vmatmul.mubr.bf16.gmra.mrb[0].mxu0 %v93
  %v153 = vpop.f32.mrb[0].mxu0
  %v154 = vadd.f32 %v36, %v153
  %v155 = vpop.f32.mrb[0].mxu0
  %v156 = vpop.f32.mrb[0].mxu0
  %v157 = vadd.f32 %v36, %v156
  %v158 = vpop.f32.mrb[0].mxu0
  %159 = vdwg.mxu0
  %vm160 = vcmask 261120
  %161 = vst.msk [vmem:[%s3] sm:$0xff] %vm160, %v130
  %162 = vst.msk [vmem:[%s3 + $0x8] sm:$0xff] %vm160, %v133
  %163 = vst.msk [vmem:[%s3 + $0x10] sm:$0xff] %vm160, %v138
  %164 = vst.msk [vmem:[%s3 + $0x18] sm:$0xff] %vm160, %v141
  %165 = vst.msk [vmem:[%s3 + $0x20] sm:$0xff] %vm160, %v146
  %166 = vst.msk [vmem:[%s3 + $0x28] sm:$0xff] %vm160, %v149
  %167 = vst.msk [vmem:[%s3 + $0x30] sm:$0xff] %vm160, %v154
  %168 = vst.msk [vmem:[%s3 + $0x38] sm:$0xff] %vm160, %v157
  // Predicated region
  $region14: #{tpu_custom_call.1} parent=0 // pred_check
    _
  $region15: #{tpu_custom_call.1} parent=0 // pred_check_branch
    %170 = sbr.rel (0) target = $region17
  $region16: #{tpu_custom_call.1} parent=0 // pred_region
    _
  $region17: #{tpu_custom_call.1} parent=0 // pred_fallthru
    _
  // Predicated region
  $region18: #{tpu_custom_call.1} parent=0 // pred_check
    _
  $region19: #{tpu_custom_call.1} parent=0 // pred_check_branch
    %172 = sbr.rel (0) target = $region21
  $region20: #{tpu_custom_call.1} parent=0 // pred_region
    _
  $region21: #{tpu_custom_call.1} parent=0 // pred_fallthru
    _

</llo_original>
